<compile_context>
chip_gen: v6e
topology: v6e:2x2x1
jax: 0.10.0
libtpu: 0.0.40
codegen_flags: <defaults>
</compile_context>

<pallas_src>
import functools

import jax
import jax.numpy as jnp
from jax.experimental import pallas as pl
from jax.experimental.pallas import tpu as pltpu


def _mha_kernel(x_ref, w_q_ref, w_kv_ref, w_out_ref, o_ref, kv_scratch,
                *, head_num, block_q):
    # x_ref:      (T, E)       bf16  full sequence of the current batch element
    # w_q_ref:    (E, E)       bf16  Q projection, head-major columns, sqrt(d) folded in
    # w_kv_ref:   (E, 2E)      bf16  K|V projection, columns [K_h0..K_h{H-1} | V_h0..]
    # w_out_ref:  (E, E)       bf16  output projection, pre-transposed (in_dim, out_dim)
    # o_ref:      (block_q, E)       final output block (projection already applied)
    # kv_scratch: (2, H, T, d) bf16  head-major K/V, persists across query blocks
    T, E = x_ref.shape
    H = head_num
    d = E // H
    qi = pl.program_id(1)

    # --- K/V projection: computed once per batch element (qi == 0), reused for
    # every query block of that batch element.
    @pl.when(qi == 0)
    def _():
        kv = jnp.dot(x_ref[...], w_kv_ref[...],
                     preferred_element_type=jnp.float32).astype(jnp.bfloat16)  # (T, 2E)
        kv_scratch[0] = jnp.stack(
            [kv[:, h * d:(h + 1) * d] for h in range(H)], axis=0)              # (H, T, d)
        kv_scratch[1] = jnp.stack(
            [kv[:, E + h * d:E + (h + 1) * d] for h in range(H)], axis=0)      # (H, T, d)

    # --- Q projection for this query block (scale already folded into the weights).
    q_start = pl.multiple_of(qi * block_q, block_q)
    xq = x_ref[pl.ds(q_start, block_q), :]                                      # (tq, E)
    q = jnp.dot(xq, w_q_ref[...],
                preferred_element_type=jnp.float32).astype(jnp.bfloat16)        # (tq, E)
    q3 = jnp.stack([q[:, h * d:(h + 1) * d] for h in range(H)], axis=0)         # (H, tq, d)

    k3 = kv_scratch[0]                                                          # (H, T, d)
    v3 = kv_scratch[1]                                                          # (H, T, d)

    # --- Head-batched attention.  energy = (q * sqrt(d)) @ k^T  (module multiplies).
    # TODO(synk): optional `mask` argument (masked_fill with -inf) not plumbed through;
    # this implements the mask=None path only.
    energy = jnp.einsum('hqd,hkd->hqk', q3, k3,
                        preferred_element_type=jnp.float32)                     # (H, tq, T)
    m = jnp.max(energy, axis=-1, keepdims=True)
    e = jnp.exp(energy - m)
    attn = e * pl.reciprocal(jnp.sum(e, axis=-1, keepdims=True), approx=True)

    ctx = jnp.einsum('hqk,hkd->hqd', attn.astype(jnp.bfloat16), v3,
                     preferred_element_type=jnp.float32)                        # (H, tq, d)

    # --- Concatenate heads back into a lane-dense (tq, E) bf16 slab, then ONE
    # E-deep output projection (full MXU contraction depth).
    ctx_slab = jnp.concatenate([ctx[h] for h in range(H)], axis=-1).astype(jnp.bfloat16)
    o_ref[...] = jnp.dot(ctx_slab, w_out_ref[...],
                         preferred_element_type=jnp.float32).astype(o_ref.dtype)


def _pick_block_q(T):
    """Largest sublane-aligned query block that divides T, capped at 512."""
    if T <= 512:
        return T
    for bq in (512, 384, 256, 128, 64, 32, 16, 8):
        if T % bq == 0 and bq % 8 == 0:
            return bq
    return T  # fall back to a single query block


def multi_head_attention(x, w_qkv, w_out, head_num, out_dtype=jnp.float32):
    """x: (B, T, E). w_qkv: (3E, E) (nn.Linear weight). w_out: (E, E). mask=None path."""
    B, T, E = x.shape
    assert E % head_num == 0
    d = E // head_num
    scale = float(d) ** 0.5  # self.dk in the PyTorch module (MULTIPLIED, not divided)

    # ---- one-time parameter re-layout (module-init work, not per-call) ----
    # einops 'b t (d k h)': fused output index = d_i*(3*H) + k_idx*H + h.
    w_r = w_qkv.reshape(d, 3, head_num, E)                        # (d, k, h, E)
    # (E, 3E): columns ordered [Q_h0..Q_h{H-1} | K_h0.. | V_h0..], each d wide.
    w_fused = jnp.transpose(w_r, (3, 1, 2, 0)).reshape(E, 3 * E)
    w_q = (w_fused[:, :E] * scale).astype(jnp.bfloat16)           # scale folded into Q
    w_kv = w_fused[:, E:].astype(jnp.bfloat16)                    # (E, 2E): K cols | V cols
    # Out projection pre-transposed so ctx_slab (columns '(h d)') @ w_out_t = output.
    w_out_t = jnp.transpose(w_out).astype(jnp.bfloat16)           # (E_in, E_out)

    x_bf = x.astype(jnp.bfloat16)

    block_q = _pick_block_q(T)
    num_q = T // block_q

    # VMEM limit from the actual chip (v5e/v6e: 128 MiB, v7x: 64 MiB physical).
    try:
        vmem_cap = int(pltpu.get_tpu_info().vmem_capacity_bytes)
    except Exception:
        vmem_cap = 64 * 1024 * 1024
    vmem_limit = vmem_cap * 3 // 4

    kernel = functools.partial(_mha_kernel, head_num=head_num, block_q=block_q)
    resident = dict(pipeline_mode=pl.Buffered(1))  # weights: block index never changes

    return pl.pallas_call(
        kernel,
        out_shape=jax.ShapeDtypeStruct((B, T, E), out_dtype),
        grid_spec=pltpu.PrefetchScalarGridSpec(
            num_scalar_prefetch=0,
            grid=(B, num_q),
            in_specs=[
                pl.BlockSpec((pl.Squeezed(), T, E), lambda b, q: (b, 0, 0)),
                pl.BlockSpec((E, E), lambda b, q: (0, 0), **resident),
                pl.BlockSpec((E, 2 * E), lambda b, q: (0, 0), **resident),
                pl.BlockSpec((E, E), lambda b, q: (0, 0), **resident),
            ],
            out_specs=pl.BlockSpec((pl.Squeezed(), block_q, E), lambda b, q: (b, q, 0)),
            scratch_shapes=[pltpu.VMEM((2, head_num, T, d), jnp.bfloat16)],
        ),
        compiler_params=pltpu.CompilerParams(
            dimension_semantics=("parallel", "arbitrary"),
            vmem_limit_bytes=vmem_limit,
        ),
    )(x_bf, w_q, w_kv, w_out_t)


def _reference(x, w_qkv, w_out, head_num):
    """Pure-JAX f32 transcription of the PyTorch forward (mask=None)."""
    B, T, E = x.shape
    d = E // head_num
    scale = d ** 0.5
    qkv = x @ w_qkv.T                                     # (B, T, 3E)
    qkv = qkv.reshape(B, T, d, 3, head_num)               # 'b t (d k h)'
    q = jnp.transpose(qkv[:, :, :, 0, :], (0, 3, 1, 2))   # (B, H, T, d)
    k = jnp.transpose(qkv[:, :, :, 1, :], (0, 3, 1, 2))
    v = jnp.transpose(qkv[:, :, :, 2, :], (0, 3, 1, 2))
    energy = jnp.einsum("bhid,bhjd->bhij", q, k) * scale
    attn = jax.nn.softmax(energy, axis=-1)
    o = jnp.einsum("bhij,bhjd->bhid", attn, v)
    o = jnp.transpose(o, (0, 2, 1, 3)).reshape(B, T, E)
    return o @ w_out.T


if __name__ == "__main__":
    B, T, E, H = 2, 8, 32, 4

    key = jax.random.PRNGKey(0)
    kx, kq, ko = jax.random.split(key, 3)
    x = jax.random.normal(kx, (B, T, E), dtype=jnp.float32)
    # nn.Linear(E, 3E, bias=False).weight -> (3E, E); nn.Linear(E, E, bias=False) -> (E, E)
    w_qkv = jax.random.normal(kq, (3 * E, E), dtype=jnp.float32) * 0.1
    w_out = jax.random.normal(ko, (E, E), dtype=jnp.float32) * 0.1

    out = multi_head_attention(x, w_qkv, w_out, H)
    out = jax.block_until_ready(out)

    ref = _reference(x, w_qkv, w_out, H)
    assert out.shape == (B, T, E)
    # bf16 MXU operands (f32 accumulation) + approx reciprocal -> loosened tolerance.
    assert jnp.allclose(out, ref, atol=5e-2, rtol=5e-2), "mismatch vs reference"

    print("KERNEL_OK")
</pallas_src>

<mosaic_0001>
module attributes {stable_mosaic.version = 11 : i64} {
  func.func @_mha_kernel(%arg0: i32, %arg1: i32, %arg2: memref<1x8x32xbf16, #tpu.memory_space<vmem>>, %arg3: memref<32x32xbf16, #tpu.memory_space<vmem>>, %arg4: memref<32x64xbf16, #tpu.memory_space<vmem>>, %arg5: memref<32x32xbf16, #tpu.memory_space<vmem>>, %arg6: memref<1x8x32xf32, #tpu.memory_space<vmem>>, %arg7: memref<2x4x8x8xbf16, #tpu.memory_space<vmem>>) attributes {dimension_semantics = [#tpu.dimension_semantics<parallel>, #tpu.dimension_semantics<arbitrary>], iteration_bounds = array<i64: 2, 1>, scalar_prefetch = 0 : i64, scratch_operands = 1 : i64, tpu.core_type = #tpu.core_type<tc>, window_params = [{transform_indices = @transform_0, window_bounds = array<i64: 1, 8, 32>}, {pipeline_mode = #tpu.pipeline_mode<synchronous>, transform_indices = @transform_1, window_bounds = array<i64: 32, 32>}, {pipeline_mode = #tpu.pipeline_mode<synchronous>, transform_indices = @transform_2, window_bounds = array<i64: 32, 64>}, {pipeline_mode = #tpu.pipeline_mode<synchronous>, transform_indices = @transform_3, window_bounds = array<i64: 32, 32>}, {transform_indices = @transform_4, window_bounds = array<i64: 1, 8, 32>}]} {
    %c0_i32 = arith.constant 0 : i32
    %0 = arith.cmpi eq, %arg1, %c0_i32 : i32
    %1 = arith.extui %0 : i1 to i32
    %c0_i32_0 = arith.constant 0 : i32
    %2 = arith.cmpi ne, %1, %c0_i32_0 : i32
    scf.if %2 {
      %c0_21 = arith.constant 0 : index
      %c0_22 = arith.constant 0 : index
      %c0_23 = arith.constant 0 : index
      %52 = vector.load %arg2[%c0_21, %c0_22, %c0_23] : memref<1x8x32xbf16, #tpu.memory_space<vmem>>, vector<1x8x32xbf16>
      %53 = vector.shape_cast %52 : vector<1x8x32xbf16> to vector<8x32xbf16>
      %c0_24 = arith.constant 0 : index
      %c0_25 = arith.constant 0 : index
      %54 = vector.load %arg4[%c0_24, %c0_25] : memref<32x64xbf16, #tpu.memory_space<vmem>>, vector<32x64xbf16>
      %cst_26 = arith.constant dense<0.000000e+00> : vector<8x64xf32>
      %55 = tpu.matmul %53, %54, %cst_26 {dimension_numbers = #tpu.dot_dimension_numbers<[1], [0], [0], [1], [0, 0, 1, 1], [], []>} : vector<8x32xbf16>, vector<32x64xbf16>, vector<8x64xf32> -> vector<8x64xf32>
      %56 = arith.truncf %55 : vector<8x64xf32> to vector<8x64xbf16>
      %57 = vector.extract_strided_slice %56 {offsets = [0, 0], sizes = [8, 8], strides = [1, 1]} : vector<8x64xbf16> to vector<8x8xbf16>
      %58 = vector.extract_strided_slice %56 {offsets = [0, 8], sizes = [8, 8], strides = [1, 1]} : vector<8x64xbf16> to vector<8x8xbf16>
      %59 = vector.extract_strided_slice %56 {offsets = [0, 16], sizes = [8, 8], strides = [1, 1]} : vector<8x64xbf16> to vector<8x8xbf16>
      %60 = vector.extract_strided_slice %56 {offsets = [0, 24], sizes = [8, 8], strides = [1, 1]} : vector<8x64xbf16> to vector<8x8xbf16>
      %61 = vector.shape_cast %57 : vector<8x8xbf16> to vector<1x8x8xbf16>
      %62 = vector.shape_cast %58 : vector<8x8xbf16> to vector<1x8x8xbf16>
      %63 = vector.shape_cast %59 : vector<8x8xbf16> to vector<1x8x8xbf16>
      %64 = vector.shape_cast %60 : vector<8x8xbf16> to vector<1x8x8xbf16>
      %65 = tpu.concatenate %61, %62, %63, %64 in 0 : vector<1x8x8xbf16>, vector<1x8x8xbf16>, vector<1x8x8xbf16>, vector<1x8x8xbf16> -> vector<4x8x8xbf16>
      %c0_27 = arith.constant 0 : index
      %c0_28 = arith.constant 0 : index
      %c0_29 = arith.constant 0 : index
      %c0_30 = arith.constant 0 : index
      %66 = vector.load %arg7[%c0_27, %c0_28, %c0_29, %c0_30] : memref<2x4x8x8xbf16, #tpu.memory_space<vmem>>, vector<1x4x8x8xbf16>
      %67 = vector.shape_cast %66 : vector<1x4x8x8xbf16> to vector<4x8x8xbf16>
      %68 = vector.shape_cast %65 : vector<4x8x8xbf16> to vector<1x4x8x8xbf16>
      tpu.vector_store %arg7[%c0_27, %c0_28, %c0_29, %c0_30], %68 {strides = array<i32>} : memref<2x4x8x8xbf16, #tpu.memory_space<vmem>>, vector<1x4x8x8xbf16>,
      %69 = vector.extract_strided_slice %56 {offsets = [0, 32], sizes = [8, 8], strides = [1, 1]} : vector<8x64xbf16> to vector<8x8xbf16>
      %70 = vector.extract_strided_slice %56 {offsets = [0, 40], sizes = [8, 8], strides = [1, 1]} : vector<8x64xbf16> to vector<8x8xbf16>
      %71 = vector.extract_strided_slice %56 {offsets = [0, 48], sizes = [8, 8], strides = [1, 1]} : vector<8x64xbf16> to vector<8x8xbf16>
      %72 = vector.extract_strided_slice %56 {offsets = [0, 56], sizes = [8, 8], strides = [1, 1]} : vector<8x64xbf16> to vector<8x8xbf16>
      %73 = vector.shape_cast %69 : vector<8x8xbf16> to vector<1x8x8xbf16>
      %74 = vector.shape_cast %70 : vector<8x8xbf16> to vector<1x8x8xbf16>
      %75 = vector.shape_cast %71 : vector<8x8xbf16> to vector<1x8x8xbf16>
      %76 = vector.shape_cast %72 : vector<8x8xbf16> to vector<1x8x8xbf16>
      %77 = tpu.concatenate %73, %74, %75, %76 in 0 : vector<1x8x8xbf16>, vector<1x8x8xbf16>, vector<1x8x8xbf16>, vector<1x8x8xbf16> -> vector<4x8x8xbf16>
      %c1_31 = arith.constant 1 : index
      %c0_32 = arith.constant 0 : index
      %c0_33 = arith.constant 0 : index
      %c0_34 = arith.constant 0 : index
      %78 = vector.load %arg7[%c1_31, %c0_32, %c0_33, %c0_34] : memref<2x4x8x8xbf16, #tpu.memory_space<vmem>>, vector<1x4x8x8xbf16>
      %79 = vector.shape_cast %78 : vector<1x4x8x8xbf16> to vector<4x8x8xbf16>
      %80 = vector.shape_cast %77 : vector<4x8x8xbf16> to vector<1x4x8x8xbf16>
      tpu.vector_store %arg7[%c1_31, %c0_32, %c0_33, %c0_34], %80 {strides = array<i32>} : memref<2x4x8x8xbf16, #tpu.memory_space<vmem>>, vector<1x4x8x8xbf16>,
    } else {
    }
    %c8_i32 = arith.constant 8 : i32
    %3 = arith.muli %arg1, %c8_i32 : i32
    %4 = tpu.assume_multiple %3, 8 : i32
    %c0 = arith.constant 0 : index
    %5 = arith.index_cast %4 : i32 to index
    %c0_1 = arith.constant 0 : index
    %6 = vector.load %arg2[%c0, %5, %c0_1] : memref<1x8x32xbf16, #tpu.memory_space<vmem>>, vector<1x8x32xbf16>
    %7 = vector.shape_cast %6 : vector<1x8x32xbf16> to vector<8x32xbf16>
    %c0_2 = arith.constant 0 : index
    %c0_3 = arith.constant 0 : index
    %8 = vector.load %arg3[%c0_2, %c0_3] : memref<32x32xbf16, #tpu.memory_space<vmem>>, vector<32x32xbf16>
    %cst = arith.constant dense<0.000000e+00> : vector<8x32xf32>
    %9 = tpu.matmul %7, %8, %cst {dimension_numbers = #tpu.dot_dimension_numbers<[1], [0], [0], [1], [0, 0, 1, 1], [], []>} : vector<8x32xbf16>, vector<32x32xbf16>, vector<8x32xf32> -> vector<8x32xf32>
    %10 = arith.truncf %9 : vector<8x32xf32> to vector<8x32xbf16>
    %11 = vector.extract_strided_slice %10 {offsets = [0, 0], sizes = [8, 8], strides = [1, 1]} : vector<8x32xbf16> to vector<8x8xbf16>
    %12 = vector.extract_strided_slice %10 {offsets = [0, 8], sizes = [8, 8], strides = [1, 1]} : vector<8x32xbf16> to vector<8x8xbf16>
    %13 = vector.extract_strided_slice %10 {offsets = [0, 16], sizes = [8, 8], strides = [1, 1]} : vector<8x32xbf16> to vector<8x8xbf16>
    %14 = vector.extract_strided_slice %10 {offsets = [0, 24], sizes = [8, 8], strides = [1, 1]} : vector<8x32xbf16> to vector<8x8xbf16>
    %15 = vector.shape_cast %11 : vector<8x8xbf16> to vector<1x8x8xbf16>
    %16 = vector.shape_cast %12 : vector<8x8xbf16> to vector<1x8x8xbf16>
    %17 = vector.shape_cast %13 : vector<8x8xbf16> to vector<1x8x8xbf16>
    %18 = vector.shape_cast %14 : vector<8x8xbf16> to vector<1x8x8xbf16>
    %19 = tpu.concatenate %15, %16, %17, %18 in 0 : vector<1x8x8xbf16>, vector<1x8x8xbf16>, vector<1x8x8xbf16>, vector<1x8x8xbf16> -> vector<4x8x8xbf16>
    %c0_4 = arith.constant 0 : index
    %c0_5 = arith.constant 0 : index
    %c0_6 = arith.constant 0 : index
    %c0_7 = arith.constant 0 : index
    %20 = vector.load %arg7[%c0_4, %c0_5, %c0_6, %c0_7] : memref<2x4x8x8xbf16, #tpu.memory_space<vmem>>, vector<1x4x8x8xbf16>
    %21 = vector.shape_cast %20 : vector<1x4x8x8xbf16> to vector<4x8x8xbf16>
    %c1 = arith.constant 1 : index
    %c0_8 = arith.constant 0 : index
    %c0_9 = arith.constant 0 : index
    %c0_10 = arith.constant 0 : index
    %22 = vector.load %arg7[%c1, %c0_8, %c0_9, %c0_10] : memref<2x4x8x8xbf16, #tpu.memory_space<vmem>>, vector<1x4x8x8xbf16>
    %23 = vector.shape_cast %22 : vector<1x4x8x8xbf16> to vector<4x8x8xbf16>
    "tpu.trace_start"() <{level = 10 : i32, message = "hqd,hkd->hqk"}> : () -> ()
    %cst_11 = arith.constant dense<0.000000e+00> : vector<4x8x8xf32>
    %24 = tpu.matmul %19, %21, %cst_11 {dimension_numbers = #tpu.dot_dimension_numbers<[2], [2], [1], [1], [0, 0, 0, 1, 1, 1], [0], [0]>} : vector<4x8x8xbf16>, vector<4x8x8xbf16>, vector<4x8x8xf32> -> vector<4x8x8xf32>
    "tpu.trace_stop"() : () -> ()
    %cst_12 = arith.constant dense<0xFF800000> : vector<4x8xf32>
    %25 = vector.multi_reduction <maximumf>, %24, %cst_12 [2] : vector<4x8x8xf32> to vector<4x8xf32>
    %26 = vector.shape_cast %25 : vector<4x8xf32> to vector<4x8x1xf32>
    %27 = vector.broadcast %26 : vector<4x8x1xf32> to vector<4x8x8xf32>
    %28 = arith.subf %24, %27 : vector<4x8x8xf32>
    %29 = math.exp %28 : vector<4x8x8xf32>
    %cst_13 = arith.constant dense<0.000000e+00> : vector<4x8xf32>
    %30 = vector.multi_reduction <add>, %29, %cst_13 [2] : vector<4x8x8xf32> to vector<4x8xf32>
    %31 = vector.shape_cast %30 : vector<4x8xf32> to vector<4x8x1xf32>
    %32 = tpu.reciprocal %31 {approx = true} : vector<4x8x1xf32> -> vector<4x8x1xf32>
    %33 = vector.broadcast %32 : vector<4x8x1xf32> to vector<4x8x8xf32>
    %34 = arith.mulf %29, %33 : vector<4x8x8xf32>
    %35 = arith.truncf %34 : vector<4x8x8xf32> to vector<4x8x8xbf16>
    "tpu.trace_start"() <{level = 10 : i32, message = "hqk,hkd->hqd"}> : () -> ()
    %cst_14 = arith.constant dense<0.000000e+00> : vector<4x8x8xf32>
    %36 = tpu.matmul %35, %23, %cst_14 {dimension_numbers = #tpu.dot_dimension_numbers<[2], [1], [1], [2], [0, 0, 0, 1, 1, 2], [0], [0]>} : vector<4x8x8xbf16>, vector<4x8x8xbf16>, vector<4x8x8xf32> -> vector<4x8x8xf32>
    "tpu.trace_stop"() : () -> ()
    %37 = vector.extract_strided_slice %36 {offsets = [0, 0, 0], sizes = [1, 8, 8], strides = [1, 1, 1]} : vector<4x8x8xf32> to vector<1x8x8xf32>
    %38 = vector.shape_cast %37 : vector<1x8x8xf32> to vector<8x8xf32>
    %39 = vector.extract_strided_slice %36 {offsets = [1, 0, 0], sizes = [1, 8, 8], strides = [1, 1, 1]} : vector<4x8x8xf32> to vector<1x8x8xf32>
    %40 = vector.shape_cast %39 : vector<1x8x8xf32> to vector<8x8xf32>
    %41 = vector.extract_strided_slice %36 {offsets = [2, 0, 0], sizes = [1, 8, 8], strides = [1, 1, 1]} : vector<4x8x8xf32> to vector<1x8x8xf32>
    %42 = vector.shape_cast %41 : vector<1x8x8xf32> to vector<8x8xf32>
    %43 = vector.extract_strided_slice %36 {offsets = [3, 0, 0], sizes = [1, 8, 8], strides = [1, 1, 1]} : vector<4x8x8xf32> to vector<1x8x8xf32>
    %44 = vector.shape_cast %43 : vector<1x8x8xf32> to vector<8x8xf32>
    %45 = tpu.concatenate %38, %40, %42, %44 in 1 : vector<8x8xf32>, vector<8x8xf32>, vector<8x8xf32>, vector<8x8xf32> -> vector<8x32xf32>
    %46 = arith.truncf %45 : vector<8x32xf32> to vector<8x32xbf16>
    %c0_15 = arith.constant 0 : index
    %c0_16 = arith.constant 0 : index
    %47 = vector.load %arg5[%c0_15, %c0_16] : memref<32x32xbf16, #tpu.memory_space<vmem>>, vector<32x32xbf16>
    %cst_17 = arith.constant dense<0.000000e+00> : vector<8x32xf32>
    %48 = tpu.matmul %46, %47, %cst_17 {dimension_numbers = #tpu.dot_dimension_numbers<[1], [0], [0], [1], [0, 0, 1, 1], [], []>} : vector<8x32xbf16>, vector<32x32xbf16>, vector<8x32xf32> -> vector<8x32xf32>
    %c0_18 = arith.constant 0 : index
    %c0_19 = arith.constant 0 : index
    %c0_20 = arith.constant 0 : index
    %49 = vector.load %arg6[%c0_18, %c0_19, %c0_20] : memref<1x8x32xf32, #tpu.memory_space<vmem>>, vector<1x8x32xf32>
    %50 = vector.shape_cast %49 : vector<1x8x32xf32> to vector<8x32xf32>
    %51 = vector.shape_cast %48 : vector<8x32xf32> to vector<1x8x32xf32>
    tpu.vector_store %arg6[%c0_18, %c0_19, %c0_20], %51 {strides = array<i32>} : memref<1x8x32xf32, #tpu.memory_space<vmem>>, vector<1x8x32xf32>,
    return
  }
  func.func @transform_0(%arg0: i32, %arg1: i32) -> (i32, i32, i32) {
    %c0_i32 = arith.constant 0 : i32
    %c0_i32_0 = arith.constant 0 : i32
    %c0_i32_1 = arith.constant 0 : i32
    return %arg0, %c0_i32, %c0_i32_0 : i32, i32, i32
  }
  func.func @transform_1(%arg0: i32, %arg1: i32) -> (i32, i32) {
    %c0_i32 = arith.constant 0 : i32
    %c0_i32_0 = arith.constant 0 : i32
    %c0_i32_1 = arith.constant 0 : i32
    return %c0_i32, %c0_i32_0 : i32, i32
  }
  func.func @transform_2(%arg0: i32, %arg1: i32) -> (i32, i32) {
    %c0_i32 = arith.constant 0 : i32
    %c0_i32_0 = arith.constant 0 : i32
    %c0_i32_1 = arith.constant 0 : i32
    return %c0_i32, %c0_i32_0 : i32, i32
  }
  func.func @transform_3(%arg0: i32, %arg1: i32) -> (i32, i32) {
    %c0_i32 = arith.constant 0 : i32
    %c0_i32_0 = arith.constant 0 : i32
    %c0_i32_1 = arith.constant 0 : i32
    return %c0_i32, %c0_i32_0 : i32, i32
  }
  func.func @transform_4(%arg0: i32, %arg1: i32) -> (i32, i32, i32) {
    %c0_i32 = arith.constant 0 : i32
    %c0_i32_0 = arith.constant 0 : i32
    return %arg0, %arg1, %c0_i32 : i32, i32, i32
  }
}

</mosaic_0001>

<llo_original>
// kernel: tpu_custom_call.1
$region0: #{tpu_custom_call.1}
  #allocation0 [shape = 'u32[]', space=smem, size = 0x4, offset = 0x4, fixed_abs, tag = 'smem constant byte address 0x4 - core index']
  #allocation1 [shape = 'u32[144,128]{1,0:T(1,128)}', space=vmem, size = 0x12000, scoped, tag = 'internal scratch']
  #allocation2 [shape = 'bf16[2,4,8,8]{3,2,1,0:T(8,128)(2,1)}', space=vmem, size = 0x4000, scoped, tag = 'scratch operand']
  %s0 = inlined_call_operand.hbm [shape: bf16[2,8,32], index: 0, kind: input, shape index: {}]
  %s1 = inlined_call_operand.hbm [shape: bf16[32,32], index: 1, kind: input, shape index: {}]
  %s2 = inlined_call_operand.hbm [shape: bf16[32,64], index: 2, kind: input, shape index: {}]
  %s3 = inlined_call_operand.hbm [shape: bf16[32,32], index: 3, kind: input, shape index: {}]
  %s4 = inlined_call_operand.hbm [shape: f32[2,8,32], index: 4, kind: output, shape index: {}]
  %s5 = sld [smem:[#allocation0]]
  $region69: #{tpu_custom_call.1} parent=0
    _
  %s7 = ssub.s32 1, %s5
  %s8 = scalar_select 0, %s7, %s5
  $region1: #{tpu_custom_call.1} parent=0
    #allocation3 [shape = 'u8[4096]{0}', space=vmem, size = 0x1000, scoped, tag = 'input window, operand 0']
    #allocation4 [shape = 's32[2]{0}', space=sflag, size = 0x8, scoped, tag = 'scoped memory for tpu_custom_call.1']
    #allocation5 [shape = 's32[2]{0}', space=sflag, size = 0x8, scoped, tag = 'scoped memory for tpu_custom_call.1']
    #allocation6 [shape = 'u8[8192]{0}', space=vmem, size = 0x2000, scoped, tag = 'input window, operand 1, single buffered']
    #allocation7 [shape = 's32[1]{0}', space=sflag, size = 0x4, scoped, tag = 'scoped memory for tpu_custom_call.1']
    #allocation8 [shape = 'u8[8192]{0}', space=vmem, size = 0x2000, scoped, tag = 'input window, operand 2, single buffered']
    #allocation9 [shape = 'u8[8192]{0}', space=vmem, size = 0x2000, scoped, tag = 'input window, operand 3, single buffered']
    #allocation10 [shape = 's32[1]{0}', space=sflag, size = 0x4, scoped, tag = 'scoped memory for tpu_custom_call.1']
    #allocation11 [shape = 'u8[8192]{0}', space=vmem, size = 0x2000, scoped, tag = 'output window, operand 0']
    %9 = vsyncpa [#allocation4], 0
    %s10 = scalar_lea.sflag [#allocation4], 1
    %11 = vsyncpa %s10, 0
    %12 = vsyncpa [#allocation7], 0
    %13 = vsyncpa [#allocation10], 0
    %14 = vsyncpa [#allocation5], 0
    %s15 = scalar_lea.sflag [#allocation5], 1
    %16 = vsyncpa %s15, 0
    loop: start=0, step=1, limit=4
    $region2: #{tpu_custom_call.1} parent=1 // loop_pre_header
      _
    $region3: #{tpu_custom_call.1} parent=1 // loop_header
      %s18 = sphi 0, %s22
      %p19 = scmp.ge.s32.totalorder %s18, 4
      %s25 = sphi 0, %s37
      %s26 = sphi 0, %s33
      %s27 = sphi 0, %s25
      %s28 = sphi 0, %s26
      %s29 = sphi 0, %s27
      %s30 = sphi 0, %s28
      %s40 = sphi 0, %s42
      %s43 = sphi 0, %s40
      %s44 = sphi 0, %s43
      %s60 = sphi 0, %s44
      %s64 = sphi 0, %s64
      %s66 = sphi 0, %s64
      %s67 = sphi 0, %s66
      %s81 = sphi 0, %s67
      %s85 = sphi 0, %s85
      %s87 = sphi 0, %s85
      %s88 = sphi 0, %s87
      %s102 = sphi 0, %s88
      %s106 = sphi 0, %s106
      %s108 = sphi 0, %s106
      %s109 = sphi 0, %s108
      %s123 = sphi 0, %s109
      %s131 = sphi 0, %s133
      %s134 = sphi 0, %s131
      %s135 = sphi 0, %s134
      %s151 = sphi 0, %s135
    $region4: #{tpu_custom_call.1} parent=1 // loop_header_branch
      %21 = sbr.rel (%p19) target = $region8
    $region5: #{tpu_custom_call.1} parent=1 // loop_body
      %s23 = ssub.s32 %s18, 1
      %s24 = ssub.s32 %s18, 2
      %s31 = sadd.s32 1, %s26
      %p32 = scmp.ge.s32.totalorder %s31, 1
      %s33 = scalar_select %p32, 0, %s31
      %s34 = sadd.s32 1, %s25
      %s35 = scalar_select %p32, %s34, %s25
      %p36 = scmp.ge.s32.totalorder %s35, 2
      %s37 = scalar_select %p36, 0, %s35
      %s38 = ssub.s32 %s25, %s37
      %p39 = scmp.eq.s32.totalorder %s38, 0
      %s41 = sadd.s32 %s40, 1
      %s42 = scalar_select %p39, %s40, %s41
      %p45 = pneg %p39
      %p46 = scmp.eq.s32.totalorder %s18, 1
      %p47 = por %p45, %p46
      %p48 = scmp.ne.s32.totalorder %s40, %s43
      %p49 = scmp.eq.s32.totalorder %s18, 0
      %p50 = por %p48, %p49
      %p51 = scmp.ne.s32.totalorder %s40, %s43
      %p52 = scmp.eq.s32.totalorder %s23, 1
      %p53 = por %p51, %p52
      %p54 = scmp.ne.s32.totalorder %s43, %s44
      %p55 = scmp.eq.s32.totalorder %s23, 0
      %p56 = por %p54, %p55
      %p57 = scmp.ne.s32.totalorder %s43, %s44
      %p58 = scmp.eq.s32.totalorder %s24, 1
      %p59 = por %p57, %p58
      %p61 = scmp.ne.s32.totalorder %s44, %s60
      %p62 = scmp.eq.s32.totalorder %s24, 0
      %p63 = por %p61, %p62
      %s65 = sadd.s32 %s64, 1
      %p68 = scmp.eq.s32.totalorder %s18, 1
      %p69 = scmp.ne.s32.totalorder %s64, %s66
      %p70 = scmp.eq.s32.totalorder %s18, 0
      %p71 = por %p69, %p70
      %p72 = scmp.ne.s32.totalorder %s64, %s66
      %p73 = scmp.eq.s32.totalorder %s23, 1
      %p74 = por %p72, %p73
      %p75 = scmp.ne.s32.totalorder %s66, %s67
      %p76 = scmp.eq.s32.totalorder %s23, 0
      %p77 = por %p75, %p76
      %p78 = scmp.ne.s32.totalorder %s66, %s67
      %p79 = scmp.eq.s32.totalorder %s24, 1
      %p80 = por %p78, %p79
      %p82 = scmp.ne.s32.totalorder %s67, %s81
      %p83 = scmp.eq.s32.totalorder %s24, 0
      %p84 = por %p82, %p83
      %s86 = sadd.s32 %s85, 1
      %p89 = scmp.eq.s32.totalorder %s18, 1
      %p90 = scmp.ne.s32.totalorder %s85, %s87
      %p91 = scmp.eq.s32.totalorder %s18, 0
      %p92 = por %p90, %p91
      %p93 = scmp.ne.s32.totalorder %s85, %s87
      %p94 = scmp.eq.s32.totalorder %s23, 1
      %p95 = por %p93, %p94
      %p96 = scmp.ne.s32.totalorder %s87, %s88
      %p97 = scmp.eq.s32.totalorder %s23, 0
      %p98 = por %p96, %p97
      %p99 = scmp.ne.s32.totalorder %s87, %s88
      %p100 = scmp.eq.s32.totalorder %s24, 1
      %p101 = por %p99, %p100
      %p103 = scmp.ne.s32.totalorder %s88, %s102
      %p104 = scmp.eq.s32.totalorder %s24, 0
      %p105 = por %p103, %p104
      %s107 = sadd.s32 %s106, 1
      %p110 = scmp.eq.s32.totalorder %s18, 1
      %p111 = scmp.ne.s32.totalorder %s106, %s108
      %p112 = scmp.eq.s32.totalorder %s18, 0
      %p113 = por %p111, %p112
      %p114 = scmp.ne.s32.totalorder %s106, %s108
      %p115 = scmp.eq.s32.totalorder %s23, 1
      %p116 = por %p114, %p115
      %p117 = scmp.ne.s32.totalorder %s108, %s109
      %p118 = scmp.eq.s32.totalorder %s23, 0
      %p119 = por %p117, %p118
      %p120 = scmp.ne.s32.totalorder %s108, %s109
      %p121 = scmp.eq.s32.totalorder %s24, 1
      %p122 = por %p120, %p121
      %p124 = scmp.ne.s32.totalorder %s109, %s123
      %p125 = scmp.eq.s32.totalorder %s24, 0
      %p126 = por %p124, %p125
      %s127 = ssub.s32 %s25, %s37
      %s128 = ssub.s32 %s26, %s33
      %s129 = sor.u32 %s127, %s128
      %p130 = scmp.eq.s32.totalorder %s129, 0
      %s132 = sadd.s32 %s131, 1
      %s133 = scalar_select %p130, %s131, %s132
      %p136 = pneg %p130
      %p137 = scmp.eq.s32.totalorder %s18, 1
      %p138 = por %p136, %p137
      %p139 = scmp.ne.s32.totalorder %s131, %s134
      %p140 = scmp.eq.s32.totalorder %s18, 0
      %p141 = por %p139, %p140
      %p142 = scmp.ne.s32.totalorder %s131, %s134
      %p143 = scmp.eq.s32.totalorder %s23, 1
      %p144 = por %p142, %p143
      %p145 = scmp.ne.s32.totalorder %s134, %s135
      %p146 = scmp.eq.s32.totalorder %s23, 0
      %p147 = por %p145, %p146
      %p148 = scmp.ne.s32.totalorder %s134, %s135
      %p149 = scmp.eq.s32.totalorder %s24, 1
      %p150 = por %p148, %p149
      %p152 = scmp.ne.s32.totalorder %s135, %s151
      %p153 = scmp.eq.s32.totalorder %s24, 0
      %p154 = por %p152, %p153
      %p155 = scmp.le.s32.totalorder 1, %s18
      %p156 = scmp.lt.s32.totalorder %s18, 3
      %p157 = pnand %p155, %p156
      %p158 = pneg %p157
      // Predicated region
      $region9: #{tpu_custom_call.1} parent=5 // pred_check
        _
      $region10: #{tpu_custom_call.1} parent=5 // pred_check_branch
        %160 = sbr.rel (%p157) target = $region12
      $region11: #{tpu_custom_call.1} parent=5 // pred_region
        %s161 = ssub.s32 %s18, 1
        // Predicated region
        $region13: #{tpu_custom_call.1} parent=11 // pred_check
          %p162 = pneg %p77
        $region14: #{tpu_custom_call.1} parent=11 // pred_check_branch
          %164 = sbr.rel (%p162) target = $region16
        $region15: #{tpu_custom_call.1} parent=11 // pred_region
          %s166 = ssub.s32 256, 256
          %167 = vsyncadd [#allocation7], %s166
          %s168 = sshll.u32 [#allocation6], 4
          %s169 = int_to_ptr.vmem [resolvable:$true] %s168
          %174 = dma.hbm_to_vmem [thread:$0]  %s1, 256, %s169, [#allocation7], 64, 64, 4
        $region16: #{tpu_custom_call.1} parent=11 // pred_fallthru
          _
        // Predicated region
        $region17: #{tpu_custom_call.1} parent=11 // pred_check
          %p175 = pneg %p98
        $region18: #{tpu_custom_call.1} parent=11 // pred_check_branch
          %177 = sbr.rel (%p175) target = $region20
        $region19: #{tpu_custom_call.1} parent=11 // pred_region
          %s179 = ssub.s32 256, 256
          %180 = vsyncadd [#allocation7], %s179
          %s181 = sshll.u32 [#allocation8], 4
          %s182 = int_to_ptr.vmem [resolvable:$true] %s181
          %187 = dma.hbm_to_vmem [thread:$0]  %s2, 256, %s182, [#allocation7], 64, 64, 4
        $region20: #{tpu_custom_call.1} parent=11 // pred_fallthru
          _
        // Predicated region
        $region21: #{tpu_custom_call.1} parent=11 // pred_check
          %p188 = pneg %p119
        $region22: #{tpu_custom_call.1} parent=11 // pred_check_branch
          %190 = sbr.rel (%p188) target = $region24
        $region23: #{tpu_custom_call.1} parent=11 // pred_region
          %s192 = ssub.s32 256, 256
          %193 = vsyncadd [#allocation10], %s192
          %s194 = sshll.u32 [#allocation9], 4
          %s195 = int_to_ptr.vmem [resolvable:$true] %s194
          %200 = dma.hbm_to_vmem [thread:$0]  %s3, 256, %s195, [#allocation10], 64, 64, 4
        $region24: #{tpu_custom_call.1} parent=11 // pred_fallthru
          _
      $region12: #{tpu_custom_call.1} parent=5 // pred_fallthru
        _
      %p201 = scmp.lt.s32.totalorder %s18, 2
      // Predicated region
      $region25: #{tpu_custom_call.1} parent=5 // pred_check
        %p202 = pneg %p201
      $region26: #{tpu_custom_call.1} parent=5 // pred_check_branch
        %204 = sbr.rel (%p202) target = $region28
      $region27: #{tpu_custom_call.1} parent=5 // pred_region
        // Predicated region
        $region29: #{tpu_custom_call.1} parent=27 // pred_check
          %p205 = pneg %p50
        $region30: #{tpu_custom_call.1} parent=27 // pred_check_branch
          %207 = sbr.rel (%p205) target = $region32
        $region31: #{tpu_custom_call.1} parent=27 // pred_region
          %s208 = sand.u32 %s40, 1
          %s209 = scalar_lea.sflag [#allocation4], %s208
          %s210 = sand.u32 %s40, 1
          %s211 = smul.addr %s210, 4
          %s212 = scalar_lea.vmem [#allocation3], %s211
          %s214 = ssub.s32 64, 64
          %215 = vsyncadd %s209, %s214
          %s216 = smul.addr %s25, 64
          %s217 = scalar_lea.hbm %s0, %s216
          %s219 = sshll.u32 %s212, 4
          %s220 = int_to_ptr.vmem [resolvable:$true] %s219
          %222 = dma.hbm_to_vmem [thread:$0]  %s217, 64, %s220, %s209
        $region32: #{tpu_custom_call.1} parent=27 // pred_fallthru
          _
      $region28: #{tpu_custom_call.1} parent=5 // pred_fallthru
        _
      %p223 = scmp.le.s32.totalorder 1, %s18
      %p224 = scmp.lt.s32.totalorder %s18, 3
      %p225 = pnand %p223, %p224
      %p226 = pneg %p225
      // Predicated region
      $region33: #{tpu_custom_call.1} parent=5 // pred_check
        _
      $region34: #{tpu_custom_call.1} parent=5 // pred_check_branch
        %228 = sbr.rel (%p225) target = $region36
      $region35: #{tpu_custom_call.1} parent=5 // pred_region
        %s229 = ssub.s32 %s18, 1
        %s230 = sand.u32 %s43, 1
        %s231 = scalar_lea.sflag [#allocation4], %s230
        %s232 = sand.u32 %s43, 1
        %s233 = smul.addr %s232, 4
        %s234 = scalar_lea.vmem [#allocation3], %s233
        // Predicated region
        $region37: #{tpu_custom_call.1} parent=35 // pred_check
          %p235 = pneg %p56
        $region38: #{tpu_custom_call.1} parent=35 // pred_check_branch
          %237 = sbr.rel (%p235) target = $region40
        $region39: #{tpu_custom_call.1} parent=35 // pred_region
          %238 = dma.done %s231, 64
        $region40: #{tpu_custom_call.1} parent=35 // pred_fallthru
          _
        // Predicated region
        $region41: #{tpu_custom_call.1} parent=35 // pred_check
          %p239 = pneg %p77
        $region42: #{tpu_custom_call.1} parent=35 // pred_check_branch
          %241 = sbr.rel (%p239) target = $region44
        $region43: #{tpu_custom_call.1} parent=35 // pred_region
          %242 = dma.done [#allocation7], 256
        $region44: #{tpu_custom_call.1} parent=35 // pred_fallthru
          _
        // Predicated region
        $region45: #{tpu_custom_call.1} parent=35 // pred_check
          %p243 = pneg %p98
        $region46: #{tpu_custom_call.1} parent=35 // pred_check_branch
          %245 = sbr.rel (%p243) target = $region48
        $region47: #{tpu_custom_call.1} parent=35 // pred_region
          %246 = dma.done [#allocation7], 256
        $region48: #{tpu_custom_call.1} parent=35 // pred_fallthru
          _
        // Predicated region
        $region49: #{tpu_custom_call.1} parent=35 // pred_check
          %p247 = pneg %p119
        $region50: #{tpu_custom_call.1} parent=35 // pred_check_branch
          %249 = sbr.rel (%p247) target = $region52
        $region51: #{tpu_custom_call.1} parent=35 // pred_region
          %250 = dma.done [#allocation10], 256
        $region52: #{tpu_custom_call.1} parent=35 // pred_fallthru
          _
        %s251 = sand.u32 %s43, 1
        %s252 = scalar_lea.sflag [#allocation4], %s251
        %s253 = sand.u32 %s43, 1
        %s254 = smul.addr %s253, 4
        %s255 = scalar_lea.vmem [#allocation3], %s254
        %p256 = pneg %p56
        %p257 = pneg %p53
        %p258 = pneg %p77
        %p259 = pneg %p74
        %p260 = pneg %p98
        %p261 = pneg %p95
        %p262 = pneg %p119
        %p263 = pneg %p116
        %p264 = pneg %p147
        %p265 = pneg %p144
        %s266 = sand.u32 %s134, 1
        %s267 = scalar_lea.sflag [#allocation5], %s266
        %s268 = sand.u32 %s134, 1
        %s269 = smul.addr %s268, 8
        %s270 = scalar_lea.vmem [#allocation11], %s269
        %p272 = scmp.eq.s32.totalorder %s28, 0
        // Predicated region
        $region53: #{tpu_custom_call.1} parent=35 // pred_check
          %p273 = pneg %p272
        $region54: #{tpu_custom_call.1} parent=35 // pred_check_branch
          %275 = sbr.rel (%p273) target = $region56
        $region55: #{tpu_custom_call.1} parent=35 // pred_region
          %v276 = vld [vmem:[%s234] sm:$0xf]
          %v277 = vld [vmem:[#allocation8] sm:$0xf]
          %v278 = vld [vmem:[#allocation8 + $0x4] sm:$0xf]
          %v279 = vld [vmem:[#allocation8 + $0x8] sm:$0xf]
          %v280 = vld [vmem:[#allocation8 + $0xc] sm:$0xf]
          %v285 = vunpack.c.l.b16 %v277
          %v286 = vunpack.c.l.b16 %v278
          %v287 = vunpack.c.l.b16 %v279
          %v288 = vunpack.c.l.b16 %v280
          %v289 = vpack.c.b16 %v286, %v285
          %v290 = vpack.c.b16 %v288, %v287
          %vm293 = vcmask 261120
          %v295 = vsel %vm293, %v276, 0
          %297 = vmatprep.subr.bf16.mxu0 0
          %298 = vmatpush1.bf16.msra.mxu0 0
          %299 = vmatprep.subr.bf16.mxu0 0
          %300 = vmatpush1.bf16.msra.mxu0 0
          %301 = vmatprep.subr.bf16.mxu0 0
          %302 = vmatpush1.bf16.msra.mxu0 0
          %303 = vmatprep.subr.bf16.mxu0 0
          %304 = vmatpush1.bf16.msra.mxu0 0
          %305 = vmatprep.subr.bf16.mxu0 0
          %306 = vmatpush1.bf16.msra.mxu0 0
          %307 = vmatprep.subr.bf16.mxu0 0
          %308 = vmatpush1.bf16.msra.mxu0 0
          %309 = vmatprep.subr.bf16.mxu0 0
          %310 = vmatpush1.bf16.msra.mxu0 %v290
          %311 = vmatprep.subr.bf16.mxu0 0
          %312 = vmatpush1.bf16.msra.mxu0 %v289
          %313 = vmatprep.subr.bf16.mxu0 0
          %314 = vmatpush2.bf16.msra.mxu0 0
          %315 = vmatprep.subr.bf16.mxu0 0
          %316 = vmatpush2.bf16.msra.mxu0 0
          %317 = vmatprep.subr.bf16.mxu0 0
          %318 = vmatpush2.bf16.msra.mxu0 0
          %319 = vmatprep.subr.bf16.mxu0 0
          %320 = vmatpush2.bf16.msra.mxu0 0
          %321 = vmatprep.subr.bf16.mxu0 0
          %322 = vmatpush2.bf16.msra.mxu0 0
          %323 = vmatprep.subr.bf16.mxu0 0
          %324 = vmatpush2.bf16.msra.mxu0 0
          %325 = vmatprep.subr.bf16.mxu0 0
          %326 = vmatpush2.bf16.msra.mxu0 0
          %327 = vmatprep.subr.bf16.mxu0 0
          %328 = vmatpush2.bf16.msra.mxu0 0
          %329 = vmatprep.mubr.bf16.mxu0 0
          %330 = vmatmul.mubr.bf16.gmra.mxu0 %v295
          %v331 = vpop.f32.mrf.mxu0
          %v332 = vadd.f32 0.0, %v331
          %v333 = vpop.f32.mrf.mxu0
          %v334 = vpop.f32.mrf.mxu0
          %v335 = vpop.f32.mrf.mxu0
          %336 = vdwg.mxu0
          %v337 = vpack.c.bf16 %v332, %v332
          %339 = vrot.lane.b32.xlu0 %v337, 120
          %v340 = vpop.permute.xlu0 %339
          %342 = vrot.lane.b32.xlu0 %v337, 112
          %v343 = vpop.permute.xlu0 %342
          %345 = vrot.lane.b32.xlu0 %v337, 104
          %v346 = vpop.permute.xlu0 %345
          %vm348 = vcmask 60416
          %349 = vst.msk [vmem:[#allocation2] sm:$0xf] %vm348, %v337
          %350 = vst.msk [vmem:[#allocation2 + $0x4] sm:$0xf] %vm348, %v340
          %351 = vst.msk [vmem:[#allocation2 + $0x8] sm:$0xf] %vm348, %v343
          %352 = vst.msk [vmem:[#allocation2 + $0xc] sm:$0xf] %vm348, %v346
          %v353 = vunpack.c.l.b16 %v337
          %v354 = vunpack.c.l.b16 %v340
          %v355 = vunpack.c.l.b16 %v343
          %v356 = vunpack.c.l.b16 %v346
          %v357 = vpack.c.b16 %v353, %v353
          %v358 = vpack.c.b16 %v354, %v354
          %v359 = vpack.c.b16 %v355, %v355
          %v360 = vpack.c.b16 %v356, %v356
          %361 = vrot.lane.b32.xlu0 %v357, 96
          %v362 = vpop.permute.xlu0 %361
          %363 = vrot.lane.b32.xlu0 %v358, 96
          %v364 = vpop.permute.xlu0 %363
          %365 = vrot.lane.b32.xlu0 %v359, 96
          %v366 = vpop.permute.xlu0 %365
          %367 = vrot.lane.b32.xlu0 %v360, 96
          %v368 = vpop.permute.xlu0 %367
          %s373 = scalar_lea.vmem [#allocation2], 16
          %374 = vst.msk [vmem:[%s373] sm:$0xf] %vm348, %v362
          %375 = vst.msk [vmem:[%s373 + $0x4] sm:$0xf] %vm348, %v364
          %376 = vst.msk [vmem:[%s373 + $0x8] sm:$0xf] %vm348, %v366
          %377 = vst.msk [vmem:[%s373 + $0xc] sm:$0xf] %vm348, %v368
        $region56: #{tpu_custom_call.1} parent=35 // pred_fallthru
          _
        %s378 = smul.u32 %s28, 8
        %s379 = sshra.s32 %s378, 3
        %s380 = sand.u32 %s378, 7
        %s381 = smul.addr %s379, 4
        %s382 = scalar_lea.vmem %s234, %s381 [#allocation3]
        %v383 = vld [vmem:[%s382] sm:$0xf]
        %v384 = vld [vmem:[#allocation6] sm:$0xf]
        %v385 = vld [vmem:[#allocation6 + $0x4] sm:$0xf]
        %v386 = vld [vmem:[#allocation6 + $0x8] sm:$0xf]
        %v387 = vld [vmem:[#allocation6 + $0xc] sm:$0xf]
        %v392 = vunpack.c.l.b16 %v384
        %v393 = vunpack.c.l.b16 %v385
        %v394 = vunpack.c.l.b16 %v386
        %v395 = vunpack.c.l.b16 %v387
        %v396 = vpack.c.b16 %v393, %v392
        %v397 = vpack.c.b16 %v395, %v394
        %vm400 = vcmask 261120
        %v402 = vsel %vm400, %v383, 0
        %404 = vmatprep.subr.bf16.mxu0 0
        %405 = vmatpush1.bf16.msra.mxu0 0
        %406 = vmatprep.subr.bf16.mxu0 0
        %407 = vmatpush1.bf16.msra.mxu0 0
        %408 = vmatprep.subr.bf16.mxu0 0
        %409 = vmatpush1.bf16.msra.mxu0 0
        %410 = vmatprep.subr.bf16.mxu0 0
        %411 = vmatpush1.bf16.msra.mxu0 0
        %412 = vmatprep.subr.bf16.mxu0 0
        %413 = vmatpush1.bf16.msra.mxu0 0
        %414 = vmatprep.subr.bf16.mxu0 0
        %415 = vmatpush1.bf16.msra.mxu0 0
        %416 = vmatprep.subr.bf16.mxu0 0
        %417 = vmatpush1.bf16.msra.mxu0 %v397
        %418 = vmatprep.subr.bf16.mxu0 0
        %419 = vmatpush1.bf16.msra.mxu0 %v396
        %420 = vmatprep.subr.bf16.mxu0 0
        %421 = vmatpush2.bf16.msra.mxu0 0
        %422 = vmatprep.subr.bf16.mxu0 0
        %423 = vmatpush2.bf16.msra.mxu0 0
        %424 = vmatprep.subr.bf16.mxu0 0
        %425 = vmatpush2.bf16.msra.mxu0 0
        %426 = vmatprep.subr.bf16.mxu0 0
        %427 = vmatpush2.bf16.msra.mxu0 0
        %428 = vmatprep.subr.bf16.mxu0 0
        %429 = vmatpush2.bf16.msra.mxu0 0
        %430 = vmatprep.subr.bf16.mxu0 0
        %431 = vmatpush2.bf16.msra.mxu0 0
        %432 = vmatprep.subr.bf16.mxu0 0
        %433 = vmatpush2.bf16.msra.mxu0 0
        %434 = vmatprep.subr.bf16.mxu0 0
        %435 = vmatpush2.bf16.msra.mxu0 0
        %436 = vmatprep.mubr.bf16.mxu0 0
        %437 = vmatmul.mubr.bf16.gmra.mxu0 %v402
        %v438 = vpop.f32.mrf.mxu0
        %v439 = vadd.f32 0.0, %v438
        %v440 = vpop.f32.mrf.mxu0
        %v441 = vpop.f32.mrf.mxu0
        %v442 = vpop.f32.mrf.mxu0
        %443 = vdwg.mxu0
        %v444 = vpack.c.bf16 %v439, %v439
        %446 = vrot.lane.b32.xlu0 %v444, 120
        %v447 = vpop.permute.xlu0 %446
        %448 = vrot.lane.b32.xlu0 %v444, 112
        %v449 = vpop.permute.xlu0 %448
        %450 = vrot.lane.b32.xlu0 %v444, 104
        %v451 = vpop.permute.xlu0 %450
        %v452 = vld [vmem:[#allocation2] sm:$0xf]
        %v453 = vld [vmem:[#allocation2 + $0x4] sm:$0xf]
        %v454 = vld [vmem:[#allocation2 + $0x8] sm:$0xf]
        %v455 = vld [vmem:[#allocation2 + $0xc] sm:$0xf]
        %s456 = scalar_lea.vmem [#allocation2], 16
        %v457 = vld [vmem:[%s456] sm:$0xf]
        %v458 = vld [vmem:[%s456 + $0x4] sm:$0xf]
        %v459 = vld [vmem:[%s456 + $0x8] sm:$0xf]
        %v460 = vld [vmem:[%s456 + $0xc] sm:$0xf]
        %vm461 = vcmask 64512
        %v463 = vsel %vm461, %v444, 0
        %v466 = vsel %vm461, %v452, 0
        %468 = vmatprep.subr.bf16.mxu0 0
        %469 = vmatpush1.bf16.xpose.msra.mxu0 0
        %470 = vmatprep.subr.bf16.mxu0 0
        %471 = vmatpush1.bf16.xpose.msra.mxu0 0
        %472 = vmatprep.subr.bf16.mxu0 0
        %473 = vmatpush1.bf16.xpose.msra.mxu0 0
        %474 = vmatprep.subr.bf16.mxu0 0
        %475 = vmatpush1.bf16.xpose.msra.mxu0 0
        %476 = vmatprep.subr.bf16.mxu0 0
        %477 = vmatpush1.bf16.xpose.msra.mxu0 0
        %478 = vmatprep.subr.bf16.mxu0 0
        %479 = vmatpush1.bf16.xpose.msra.mxu0 0
        %480 = vmatprep.subr.bf16.mxu0 0
        %481 = vmatpush1.bf16.xpose.msra.mxu0 0
        %482 = vmatprep.subr.bf16.mxu0 0
        %483 = vmatpush1.bf16.xpose.msra.mxu0 %v466
        %484 = vmatprep.subr.bf16.mxu0 0
        %485 = vmatpush2.bf16.xpose.msra.mxu0 0
        %486 = vmatprep.subr.bf16.mxu0 0
        %487 = vmatpush2.bf16.xpose.msra.mxu0 0
        %488 = vmatprep.subr.bf16.mxu0 0
        %489 = vmatpush2.bf16.xpose.msra.mxu0 0
        %490 = vmatprep.subr.bf16.mxu0 0
        %491 = vmatpush2.bf16.xpose.msra.mxu0 0
        %492 = vmatprep.subr.bf16.mxu0 0
        %493 = vmatpush2.bf16.xpose.msra.mxu0 0
        %494 = vmatprep.subr.bf16.mxu0 0
        %495 = vmatpush2.bf16.xpose.msra.mxu0 0
        %496 = vmatprep.subr.bf16.mxu0 0
        %497 = vmatpush2.bf16.xpose.msra.mxu0 0
        %498 = vmatprep.subr.bf16.mxu0 0
        %499 = vmatpush2.bf16.xpose.msra.mxu0 0
        %500 = vmatprep.mubr.bf16.mxu0 0
        %501 = vmatmul.mubr.bf16.gmra.mxu0 %v463
        %v502 = vpop.f32.mrf.mxu0
        %v503 = vadd.f32 0.0, %v502
        %v504 = vpop.f32.mrf.mxu0
        %v505 = vpop.f32.mrf.mxu0
        %v506 = vpop.f32.mrf.mxu0
        %507 = vdwg.mxu0
        %v509 = vsel %vm461, %v447, 0
        %v512 = vsel %vm461, %v453, 0
        %514 = vmatprep.subr.bf16.mxu0 0
        %515 = vmatpush1.bf16.xpose.msra.mxu0 0
        %516 = vmatprep.subr.bf16.mxu0 0
        %517 = vmatpush1.bf16.xpose.msra.mxu0 0
        %518 = vmatprep.subr.bf16.mxu0 0
        %519 = vmatpush1.bf16.xpose.msra.mxu0 0
        %520 = vmatprep.subr.bf16.mxu0 0
        %521 = vmatpush1.bf16.xpose.msra.mxu0 0
        %522 = vmatprep.subr.bf16.mxu0 0
        %523 = vmatpush1.bf16.xpose.msra.mxu0 0
        %524 = vmatprep.subr.bf16.mxu0 0
        %525 = vmatpush1.bf16.xpose.msra.mxu0 0
        %526 = vmatprep.subr.bf16.mxu0 0
        %527 = vmatpush1.bf16.xpose.msra.mxu0 0
        %528 = vmatprep.subr.bf16.mxu0 0
        %529 = vmatpush1.bf16.xpose.msra.mxu0 %v512
        %530 = vmatprep.subr.bf16.mxu0 0
        %531 = vmatpush2.bf16.xpose.msra.mxu0 0
        %532 = vmatprep.subr.bf16.mxu0 0
        %533 = vmatpush2.bf16.xpose.msra.mxu0 0
        %534 = vmatprep.subr.bf16.mxu0 0
        %535 = vmatpush2.bf16.xpose.msra.mxu0 0
        %536 = vmatprep.subr.bf16.mxu0 0
        %537 = vmatpush2.bf16.xpose.msra.mxu0 0
        %538 = vmatprep.subr.bf16.mxu0 0
        %539 = vmatpush2.bf16.xpose.msra.mxu0 0
        %540 = vmatprep.subr.bf16.mxu0 0
        %541 = vmatpush2.bf16.xpose.msra.mxu0 0
        %542 = vmatprep.subr.bf16.mxu0 0
        %543 = vmatpush2.bf16.xpose.msra.mxu0 0
        %544 = vmatprep.subr.bf16.mxu0 0
        %545 = vmatpush2.bf16.xpose.msra.mxu0 0
        %546 = vmatprep.mubr.bf16.mxu0 0
        %547 = vmatmul.mubr.bf16.gmra.mxu0 %v509
        %v548 = vpop.f32.mrf.mxu0
        %v549 = vadd.f32 0.0, %v548
        %v550 = vpop.f32.mrf.mxu0
        %v551 = vpop.f32.mrf.mxu0
        %v552 = vpop.f32.mrf.mxu0
        %553 = vdwg.mxu0
        %v555 = vsel %vm461, %v449, 0
        %v558 = vsel %vm461, %v454, 0
        %560 = vmatprep.subr.bf16.mxu0 0
        %561 = vmatpush1.bf16.xpose.msra.mxu0 0
        %562 = vmatprep.subr.bf16.mxu0 0
        %563 = vmatpush1.bf16.xpose.msra.mxu0 0
        %564 = vmatprep.subr.bf16.mxu0 0
        %565 = vmatpush1.bf16.xpose.msra.mxu0 0
        %566 = vmatprep.subr.bf16.mxu0 0
        %567 = vmatpush1.bf16.xpose.msra.mxu0 0
        %568 = vmatprep.subr.bf16.mxu0 0
        %569 = vmatpush1.bf16.xpose.msra.mxu0 0
        %570 = vmatprep.subr.bf16.mxu0 0
        %571 = vmatpush1.bf16.xpose.msra.mxu0 0
        %572 = vmatprep.subr.bf16.mxu0 0
        %573 = vmatpush1.bf16.xpose.msra.mxu0 0
        %574 = vmatprep.subr.bf16.mxu0 0
        %575 = vmatpush1.bf16.xpose.msra.mxu0 %v558
        %576 = vmatprep.subr.bf16.mxu0 0
        %577 = vmatpush2.bf16.xpose.msra.mxu0 0
        %578 = vmatprep.subr.bf16.mxu0 0
        %579 = vmatpush2.bf16.xpose.msra.mxu0 0
        %580 = vmatprep.subr.bf16.mxu0 0
        %581 = vmatpush2.bf16.xpose.msra.mxu0 0
        %582 = vmatprep.subr.bf16.mxu0 0
        %583 = vmatpush2.bf16.xpose.msra.mxu0 0
        %584 = vmatprep.subr.bf16.mxu0 0
        %585 = vmatpush2.bf16.xpose.msra.mxu0 0
        %586 = vmatprep.subr.bf16.mxu0 0
        %587 = vmatpush2.bf16.xpose.msra.mxu0 0
        %588 = vmatprep.subr.bf16.mxu0 0
        %589 = vmatpush2.bf16.xpose.msra.mxu0 0
        %590 = vmatprep.subr.bf16.mxu0 0
        %591 = vmatpush2.bf16.xpose.msra.mxu0 0
        %592 = vmatprep.mubr.bf16.mxu0 0
        %593 = vmatmul.mubr.bf16.gmra.mxu0 %v555
        %v594 = vpop.f32.mrf.mxu0
        %v595 = vadd.f32 0.0, %v594
        %v596 = vpop.f32.mrf.mxu0
        %v597 = vpop.f32.mrf.mxu0
        %v598 = vpop.f32.mrf.mxu0
        %599 = vdwg.mxu0
        %v601 = vsel %vm461, %v451, 0
        %v604 = vsel %vm461, %v455, 0
        %606 = vmatprep.subr.bf16.mxu0 0
        %607 = vmatpush1.bf16.xpose.msra.mxu0 0
        %608 = vmatprep.subr.bf16.mxu0 0
        %609 = vmatpush1.bf16.xpose.msra.mxu0 0
        %610 = vmatprep.subr.bf16.mxu0 0
        %611 = vmatpush1.bf16.xpose.msra.mxu0 0
        %612 = vmatprep.subr.bf16.mxu0 0
        %613 = vmatpush1.bf16.xpose.msra.mxu0 0
        %614 = vmatprep.subr.bf16.mxu0 0
        %615 = vmatpush1.bf16.xpose.msra.mxu0 0
        %616 = vmatprep.subr.bf16.mxu0 0
        %617 = vmatpush1.bf16.xpose.msra.mxu0 0
        %618 = vmatprep.subr.bf16.mxu0 0
        %619 = vmatpush1.bf16.xpose.msra.mxu0 0
        %620 = vmatprep.subr.bf16.mxu0 0
        %621 = vmatpush1.bf16.xpose.msra.mxu0 %v604
        %622 = vmatprep.subr.bf16.mxu0 0
        %623 = vmatpush2.bf16.xpose.msra.mxu0 0
        %624 = vmatprep.subr.bf16.mxu0 0
        %625 = vmatpush2.bf16.xpose.msra.mxu0 0
        %626 = vmatprep.subr.bf16.mxu0 0
        %627 = vmatpush2.bf16.xpose.msra.mxu0 0
        %628 = vmatprep.subr.bf16.mxu0 0
        %629 = vmatpush2.bf16.xpose.msra.mxu0 0
        %630 = vmatprep.subr.bf16.mxu0 0
        %631 = vmatpush2.bf16.xpose.msra.mxu0 0
        %632 = vmatprep.subr.bf16.mxu0 0
        %633 = vmatpush2.bf16.xpose.msra.mxu0 0
        %634 = vmatprep.subr.bf16.mxu0 0
        %635 = vmatpush2.bf16.xpose.msra.mxu0 0
        %636 = vmatprep.subr.bf16.mxu0 0
        %637 = vmatpush2.bf16.xpose.msra.mxu0 0
        %638 = vmatprep.mubr.bf16.mxu0 0
        %639 = vmatmul.mubr.bf16.gmra.mxu0 %v601
        %v640 = vpop.f32.mrf.mxu0
        %v641 = vadd.f32 0.0, %v640
        %v642 = vpop.f32.mrf.mxu0
        %v643 = vpop.f32.mrf.mxu0
        %v644 = vpop.f32.mrf.mxu0
        %645 = vdwg.mxu0
        %v646 = vsel %vm461, %v503, -inf
        %647 = vmax.xlane.f32.xlu0 %v646
        %v648 = vpop.xlane.xlu0 %647
        %v649 = vsel %vm461, %v549, -inf
        %650 = vmax.xlane.f32.xlu0 %v649
        %v651 = vpop.xlane.xlu0 %650
        %v652 = vsel %vm461, %v595, -inf
        %653 = vmax.xlane.f32.xlu0 %v652
        %v654 = vpop.xlane.xlu0 %653
        %v655 = vsel %vm461, %v641, -inf
        %656 = vmax.xlane.f32.xlu0 %v655
        %v657 = vpop.xlane.xlu0 %656
        %v658 = vsub.f32 %v503, %v648
        %v659 = vsub.f32 %v549, %v651
        %v660 = vsub.f32 %v595, %v654
        %v661 = vsub.f32 %v641, %v657
        %v662 = vmul.f32 %v658, 1.442695
        %v663 = vpow.pop %v662
        %v664 = vmul.f32 %v659, 1.442695
        %v665 = vpow.pop %v664
        %v666 = vmul.f32 %v660, 1.442695
        %v667 = vpow.pop %v666
        %v668 = vmul.f32 %v661, 1.442695
        %v669 = vpow.pop %v668
        %v670 = vsel %vm461, %v663, 0.0
        %671 = vadd.xlane.f32.xlu0 %v670
        %v672 = vpop.xlane.xlu0 %671
        %v673 = vsel %vm461, %v665, 0.0
        %674 = vadd.xlane.f32.xlu0 %v673
        %v675 = vpop.xlane.xlu0 %674
        %v676 = vsel %vm461, %v667, 0.0
        %677 = vadd.xlane.f32.xlu0 %v676
        %v678 = vpop.xlane.xlu0 %677
        %v679 = vsel %vm461, %v669, 0.0
        %680 = vadd.xlane.f32.xlu0 %v679
        %v681 = vpop.xlane.xlu0 %680
        %v682 = vrcp.pop %v672
        %v683 = vrcp.pop %v675
        %v684 = vrcp.pop %v678
        %v685 = vrcp.pop %v681
        %v686 = vmul.f32 %v663, %v682
        %v687 = vmul.f32 %v665, %v683
        %v688 = vmul.f32 %v667, %v684
        %v689 = vmul.f32 %v669, %v685
        %v690 = vpack.c.bf16 %v686, %v686
        %v691 = vpack.c.bf16 %v687, %v687
        %v692 = vpack.c.bf16 %v688, %v688
        %v693 = vpack.c.bf16 %v689, %v689
        %v695 = vsel %vm461, %v690, 0
        %vm697 = vcmask 1043456
        %v699 = vsel %vm697, %v457, 0
        %701 = vmatprep.subr.bf16.mxu0 0
        %702 = vmatpush1.bf16.msra.mxu0 0
        %703 = vmatprep.subr.bf16.mxu0 0
        %704 = vmatpush1.bf16.msra.mxu0 0
        %705 = vmatprep.subr.bf16.mxu0 0
        %706 = vmatpush1.bf16.msra.mxu0 0
        %707 = vmatprep.subr.bf16.mxu0 0
        %708 = vmatpush1.bf16.msra.mxu0 0
        %709 = vmatprep.subr.bf16.mxu0 0
        %710 = vmatpush1.bf16.msra.mxu0 0
        %711 = vmatprep.subr.bf16.mxu0 0
        %712 = vmatpush1.bf16.msra.mxu0 0
        %713 = vmatprep.subr.bf16.mxu0 0
        %714 = vmatpush1.bf16.msra.mxu0 0
        %715 = vmatprep.subr.bf16.mxu0 0
        %716 = vmatpush1.bf16.msra.mxu0 %v699
        %717 = vmatprep.subr.bf16.mxu0 0
        %718 = vmatpush2.bf16.msra.mxu0 0
        %719 = vmatprep.subr.bf16.mxu0 0
        %720 = vmatpush2.bf16.msra.mxu0 0
        %721 = vmatprep.subr.bf16.mxu0 0
        %722 = vmatpush2.bf16.msra.mxu0 0
        %723 = vmatprep.subr.bf16.mxu0 0
        %724 = vmatpush2.bf16.msra.mxu0 0
        %725 = vmatprep.subr.bf16.mxu0 0
        %726 = vmatpush2.bf16.msra.mxu0 0
        %727 = vmatprep.subr.bf16.mxu0 0
        %728 = vmatpush2.bf16.msra.mxu0 0
        %729 = vmatprep.subr.bf16.mxu0 0
        %730 = vmatpush2.bf16.msra.mxu0 0
        %731 = vmatprep.subr.bf16.mxu0 0
        %732 = vmatpush2.bf16.msra.mxu0 0
        %733 = vmatprep.mubr.bf16.mxu0 0
        %734 = vmatmul.mubr.bf16.gmra.mxu0 %v695
        %v735 = vpop.f32.mrf.mxu0
        %v736 = vadd.f32 0.0, %v735
        %v737 = vpop.f32.mrf.mxu0
        %v738 = vpop.f32.mrf.mxu0
        %v739 = vpop.f32.mrf.mxu0
        %740 = vdwg.mxu0
        %v742 = vsel %vm461, %v691, 0
        %v745 = vsel %vm697, %v458, 0
        %747 = vmatprep.subr.bf16.mxu0 0
        %748 = vmatpush1.bf16.msra.mxu0 0
        %749 = vmatprep.subr.bf16.mxu0 0
        %750 = vmatpush1.bf16.msra.mxu0 0
        %751 = vmatprep.subr.bf16.mxu0 0
        %752 = vmatpush1.bf16.msra.mxu0 0
        %753 = vmatprep.subr.bf16.mxu0 0
        %754 = vmatpush1.bf16.msra.mxu0 0
        %755 = vmatprep.subr.bf16.mxu0 0
        %756 = vmatpush1.bf16.msra.mxu0 0
        %757 = vmatprep.subr.bf16.mxu0 0
        %758 = vmatpush1.bf16.msra.mxu0 0
        %759 = vmatprep.subr.bf16.mxu0 0
        %760 = vmatpush1.bf16.msra.mxu0 0
        %761 = vmatprep.subr.bf16.mxu0 0
        %762 = vmatpush1.bf16.msra.mxu0 %v745
        %763 = vmatprep.subr.bf16.mxu0 0
        %764 = vmatpush2.bf16.msra.mxu0 0
        %765 = vmatprep.subr.bf16.mxu0 0
        %766 = vmatpush2.bf16.msra.mxu0 0
        %767 = vmatprep.subr.bf16.mxu0 0
        %768 = vmatpush2.bf16.msra.mxu0 0
        %769 = vmatprep.subr.bf16.mxu0 0
        %770 = vmatpush2.bf16.msra.mxu0 0
        %771 = vmatprep.subr.bf16.mxu0 0
        %772 = vmatpush2.bf16.msra.mxu0 0
        %773 = vmatprep.subr.bf16.mxu0 0
        %774 = vmatpush2.bf16.msra.mxu0 0
        %775 = vmatprep.subr.bf16.mxu0 0
        %776 = vmatpush2.bf16.msra.mxu0 0
        %777 = vmatprep.subr.bf16.mxu0 0
        %778 = vmatpush2.bf16.msra.mxu0 0
        %779 = vmatprep.mubr.bf16.mxu0 0
        %780 = vmatmul.mubr.bf16.gmra.mxu0 %v742
        %v781 = vpop.f32.mrf.mxu0
        %v782 = vadd.f32 0.0, %v781
        %v783 = vpop.f32.mrf.mxu0
        %v784 = vpop.f32.mrf.mxu0
        %v785 = vpop.f32.mrf.mxu0
        %786 = vdwg.mxu0
        %v788 = vsel %vm461, %v692, 0
        %v791 = vsel %vm697, %v459, 0
        %793 = vmatprep.subr.bf16.mxu0 0
        %794 = vmatpush1.bf16.msra.mxu0 0
        %795 = vmatprep.subr.bf16.mxu0 0
        %796 = vmatpush1.bf16.msra.mxu0 0
        %797 = vmatprep.subr.bf16.mxu0 0
        %798 = vmatpush1.bf16.msra.mxu0 0
        %799 = vmatprep.subr.bf16.mxu0 0
        %800 = vmatpush1.bf16.msra.mxu0 0
        %801 = vmatprep.subr.bf16.mxu0 0
        %802 = vmatpush1.bf16.msra.mxu0 0
        %803 = vmatprep.subr.bf16.mxu0 0
        %804 = vmatpush1.bf16.msra.mxu0 0
        %805 = vmatprep.subr.bf16.mxu0 0
        %806 = vmatpush1.bf16.msra.mxu0 0
        %807 = vmatprep.subr.bf16.mxu0 0
        %808 = vmatpush1.bf16.msra.mxu0 %v791
        %809 = vmatprep.subr.bf16.mxu0 0
        %810 = vmatpush2.bf16.msra.mxu0 0
        %811 = vmatprep.subr.bf16.mxu0 0
        %812 = vmatpush2.bf16.msra.mxu0 0
        %813 = vmatprep.subr.bf16.mxu0 0
        %814 = vmatpush2.bf16.msra.mxu0 0
        %815 = vmatprep.subr.bf16.mxu0 0
        %816 = vmatpush2.bf16.msra.mxu0 0
        %817 = vmatprep.subr.bf16.mxu0 0
        %818 = vmatpush2.bf16.msra.mxu0 0
        %819 = vmatprep.subr.bf16.mxu0 0
        %820 = vmatpush2.bf16.msra.mxu0 0
        %821 = vmatprep.subr.bf16.mxu0 0
        %822 = vmatpush2.bf16.msra.mxu0 0
        %823 = vmatprep.subr.bf16.mxu0 0
        %824 = vmatpush2.bf16.msra.mxu0 0
        %825 = vmatprep.mubr.bf16.mxu0 0
        %826 = vmatmul.mubr.bf16.gmra.mxu0 %v788
        %v827 = vpop.f32.mrf.mxu0
        %v828 = vadd.f32 0.0, %v827
        %v829 = vpop.f32.mrf.mxu0
        %v830 = vpop.f32.mrf.mxu0
        %v831 = vpop.f32.mrf.mxu0
        %832 = vdwg.mxu0
        %v834 = vsel %vm461, %v693, 0
        %v837 = vsel %vm697, %v460, 0
        %839 = vmatprep.subr.bf16.mxu0 0
        %840 = vmatpush1.bf16.msra.mxu0 0
        %841 = vmatprep.subr.bf16.mxu0 0
        %842 = vmatpush1.bf16.msra.mxu0 0
        %843 = vmatprep.subr.bf16.mxu0 0
        %844 = vmatpush1.bf16.msra.mxu0 0
        %845 = vmatprep.subr.bf16.mxu0 0
        %846 = vmatpush1.bf16.msra.mxu0 0
        %847 = vmatprep.subr.bf16.mxu0 0
        %848 = vmatpush1.bf16.msra.mxu0 0
        %849 = vmatprep.subr.bf16.mxu0 0
        %850 = vmatpush1.bf16.msra.mxu0 0
        %851 = vmatprep.subr.bf16.mxu0 0
        %852 = vmatpush1.bf16.msra.mxu0 0
        %853 = vmatprep.subr.bf16.mxu0 0
        %854 = vmatpush1.bf16.msra.mxu0 %v837
        %855 = vmatprep.subr.bf16.mxu0 0
        %856 = vmatpush2.bf16.msra.mxu0 0
        %857 = vmatprep.subr.bf16.mxu0 0
        %858 = vmatpush2.bf16.msra.mxu0 0
        %859 = vmatprep.subr.bf16.mxu0 0
        %860 = vmatpush2.bf16.msra.mxu0 0
        %861 = vmatprep.subr.bf16.mxu0 0
        %862 = vmatpush2.bf16.msra.mxu0 0
        %863 = vmatprep.subr.bf16.mxu0 0
        %864 = vmatpush2.bf16.msra.mxu0 0
        %865 = vmatprep.subr.bf16.mxu0 0
        %866 = vmatpush2.bf16.msra.mxu0 0
        %867 = vmatprep.subr.bf16.mxu0 0
        %868 = vmatpush2.bf16.msra.mxu0 0
        %869 = vmatprep.subr.bf16.mxu0 0
        %870 = vmatpush2.bf16.msra.mxu0 0
        %871 = vmatprep.mubr.bf16.mxu0 0
        %872 = vmatmul.mubr.bf16.gmra.mxu0 %v834
        %v873 = vpop.f32.mrf.mxu0
        %v874 = vadd.f32 0.0, %v873
        %v875 = vpop.f32.mrf.mxu0
        %v876 = vpop.f32.mrf.mxu0
        %v877 = vpop.f32.mrf.mxu0
        %878 = vdwg.mxu0
        %880 = vrot.lane.b32.xlu0 %v782, 8
        %v881 = vpop.permute.xlu0 %880
        %884 = vrot.lane.b32.xlu0 %v828, 16
        %v885 = vpop.permute.xlu0 %884
        %888 = vrot.lane.b32.xlu0 %v874, 24
        %v889 = vpop.permute.xlu0 %888
        %v891 = vsel %vm461, %v736, %v881
        %vm892 = vcmask 130048
        %v893 = vsel %vm892, %v891, %v885
        %vm894 = vcmask 195584
        %v895 = vsel %vm894, %v893, %v889
        %v896 = vpack.c.bf16 %v895, %v895
        %v897 = vld [vmem:[#allocation9] sm:$0xf]
        %v898 = vld [vmem:[#allocation9 + $0x4] sm:$0xf]
        %v899 = vld [vmem:[#allocation9 + $0x8] sm:$0xf]
        %v900 = vld [vmem:[#allocation9 + $0xc] sm:$0xf]
        %v905 = vunpack.c.l.b16 %v897
        %v906 = vunpack.c.l.b16 %v898
        %v907 = vunpack.c.l.b16 %v899
        %v908 = vunpack.c.l.b16 %v900
        %v909 = vpack.c.b16 %v906, %v905
        %v910 = vpack.c.b16 %v908, %v907
        %v914 = vsel %vm400, %v896, 0
        %916 = vmatprep.subr.bf16.mxu0 0
        %917 = vmatpush1.bf16.msra.mxu0 0
        %918 = vmatprep.subr.bf16.mxu0 0
        %919 = vmatpush1.bf16.msra.mxu0 0
        %920 = vmatprep.subr.bf16.mxu0 0
        %921 = vmatpush1.bf16.msra.mxu0 0
        %922 = vmatprep.subr.bf16.mxu0 0
        %923 = vmatpush1.bf16.msra.mxu0 0
        %924 = vmatprep.subr.bf16.mxu0 0
        %925 = vmatpush1.bf16.msra.mxu0 0
        %926 = vmatprep.subr.bf16.mxu0 0
        %927 = vmatpush1.bf16.msra.mxu0 0
        %928 = vmatprep.subr.bf16.mxu0 0
        %929 = vmatpush1.bf16.msra.mxu0 %v910
        %930 = vmatprep.subr.bf16.mxu0 0
        %931 = vmatpush1.bf16.msra.mxu0 %v909
        %932 = vmatprep.subr.bf16.mxu0 0
        %933 = vmatpush2.bf16.msra.mxu0 0
        %934 = vmatprep.subr.bf16.mxu0 0
        %935 = vmatpush2.bf16.msra.mxu0 0
        %936 = vmatprep.subr.bf16.mxu0 0
        %937 = vmatpush2.bf16.msra.mxu0 0
        %938 = vmatprep.subr.bf16.mxu0 0
        %939 = vmatpush2.bf16.msra.mxu0 0
        %940 = vmatprep.subr.bf16.mxu0 0
        %941 = vmatpush2.bf16.msra.mxu0 0
        %942 = vmatprep.subr.bf16.mxu0 0
        %943 = vmatpush2.bf16.msra.mxu0 0
        %944 = vmatprep.subr.bf16.mxu0 0
        %945 = vmatpush2.bf16.msra.mxu0 0
        %946 = vmatprep.subr.bf16.mxu0 0
        %947 = vmatpush2.bf16.msra.mxu0 0
        %948 = vmatprep.mubr.bf16.mxu0 0
        %949 = vmatmul.mubr.bf16.gmra.mxu0 %v914
        %v950 = vpop.f32.mrf.mxu0
        %v951 = vadd.f32 0.0, %v950
        %v952 = vpop.f32.mrf.mxu0
        %v953 = vpop.f32.mrf.mxu0
        %v954 = vpop.f32.mrf.mxu0
        %955 = vdwg.mxu0
        %956 = vst.msk [vmem:[%s270] sm:$0xff] %vm400, %v951
        %s957 = sand.u32 %s134, 1
        %s958 = scalar_lea.sflag [#allocation5], %s957
        %s959 = sand.u32 %s134, 1
        %s960 = smul.addr %s959, 8
        %s961 = scalar_lea.vmem [#allocation11], %s960
        // Predicated region
        $region57: #{tpu_custom_call.1} parent=35 // pred_check
          %p962 = pneg %p144
        $region58: #{tpu_custom_call.1} parent=35 // pred_check_branch
          %964 = sbr.rel (%p962) target = $region60
        $region59: #{tpu_custom_call.1} parent=35 // pred_region
          %s966 = ssub.s32 128, 128
          %967 = vsyncadd %s958, %s966
          %s968 = sadd.s32 %s28, %s27
          %s969 = smul.addr %s968, 128
          %s970 = scalar_lea.hbm %s4, %s969
          %s972 = sshll.u32 %s961, 4
          %s973 = int_to_ptr.vmem [resolvable:$true] %s972
          %975 = dma.vmem_to_hbm [thread:$0]  %s973, 128, %s970, %s958
        $region60: #{tpu_custom_call.1} parent=35 // pred_fallthru
          _
      $region36: #{tpu_custom_call.1} parent=5 // pred_fallthru
        _
      %p976 = scmp.le.s32.totalorder 2, %s18
      // Predicated region
      $region61: #{tpu_custom_call.1} parent=5 // pred_check
        %p977 = pneg %p976
      $region62: #{tpu_custom_call.1} parent=5 // pred_check_branch
        %979 = sbr.rel (%p977) target = $region64
      $region63: #{tpu_custom_call.1} parent=5 // pred_region
        %s980 = ssub.s32 %s18, 2
        // Predicated region
        $region65: #{tpu_custom_call.1} parent=63 // pred_check
          %p981 = pneg %p150
        $region66: #{tpu_custom_call.1} parent=63 // pred_check_branch
          %983 = sbr.rel (%p981) target = $region68
        $region67: #{tpu_custom_call.1} parent=63 // pred_region
          %s984 = sand.u32 %s135, 1
          %s985 = scalar_lea.sflag [#allocation5], %s984
          %s986 = sand.u32 %s135, 1
          %s987 = smul.addr %s986, 8
          %s988 = scalar_lea.vmem [#allocation11], %s987
          %989 = dma.done %s985, 128
        $region68: #{tpu_custom_call.1} parent=63 // pred_fallthru
          _
      $region64: #{tpu_custom_call.1} parent=5 // pred_fallthru
        _
    $region6: #{tpu_custom_call.1} parent=1 // loop_footer
      %s22 = sadd.s32 1, %s18
    $region7: #{tpu_custom_call.1} parent=1 // loop_footer_branch
      %17 = sbr.rel target = $region3
    $region8: #{tpu_custom_call.1} parent=1 // loop_exit
      _
    %990 = vsyncpa [#allocation4], 1
    %s991 = scalar_lea.sflag [#allocation4], 1
    %992 = vsyncpa %s991, 1
    %993 = vsyncpa [#allocation7], 1
    %994 = vsyncpa [#allocation10], 1
    %995 = vsyncpa [#allocation5], 1
    %s996 = scalar_lea.sflag [#allocation5], 1
    %997 = vsyncpa %s996, 1

</llo_original>
